<compile_context>
chip_gen: v7x
topology: tpu7x:2x2x1
jax: 0.10.0
libtpu: 0.0.40
codegen_flags: <defaults>
</compile_context>

<pallas_src>
import functools

import jax
import jax.numpy as jnp
from jax.experimental import pallas as pl
from jax.experimental.pallas import tpu as pltpu

_SUBLANE = 8
_LANE = 128


def _round_up(x, m):
    return ((x + m - 1) // m) * m


def _vmem_capacity_bytes():
    """Best-effort physical VMEM query; falls back to a v7x-sized estimate."""
    try:
        info = pltpu.get_tpu_info()
        for attr in ("vmem_capacity_bytes", "vmem_size_bytes", "vmem_bytes"):
            v = getattr(info, attr, None)
            if v:
                return int(v)
    except Exception:
        pass
    return 64 * 1024 * 1024  # conservative: assume v7x-sized VMEM


def _masked_nll_kernel(*refs, n_rows, has_weight, need_row_mask):
    if has_weight:
        (pred_ref, target_ref, mask_ref, weight_ref,
         num_out_ref, den_out_ref, num_acc, den_acc) = refs
    else:
        (pred_ref, target_ref, mask_ref,
         num_out_ref, den_out_ref, num_acc) = refs
        weight_ref = None
        den_acc = None

    i = pl.program_id(0)            # row-tile index ("parallel": sharded over TCs)
    j = pl.program_id(1)            # class-tile index (reduction, "arbitrary")
    nj = pl.num_programs(1)
    tn, tc = pred_ref.shape

    @pl.when(j == 0)
    def _init():
        num_acc[...] = jnp.zeros_like(num_acc)
        if has_weight:
            den_acc[...] = jnp.zeros_like(den_acc)

    pred = pred_ref[...]                             # (tn, tc) native dtype
    tgt = target_ref[...]                            # (tn, 1) int32
    msk = mask_ref[...].astype(jnp.float32)          # (tn, 1)

    # Local one-hot: local lane iota vs (target - class_tile_offset).
    col = jax.lax.broadcasted_iota(jnp.int32, (tn, tc), 1)
    hit = col == (tgt - j * tc)                      # (tn, tc) bool

    # Exactly one nonzero per row -> select + lane-reduce is exact in the
    # native dtype; upcast only the (tn, 1) result.
    gathered = jnp.sum(jnp.where(hit, pred, jnp.zeros((), pred.dtype)),
                       axis=1, keepdims=True).astype(jnp.float32)

    if need_row_mask:
        row = jax.lax.broadcasted_iota(jnp.int32, (tn, 1), 0)
        valid = (i * tn + row) < n_rows              # gate ragged-last-tile garbage
    else:
        valid = None

    if has_weight:
        w = weight_ref[...].astype(jnp.float32)      # (1, tc)
        w_t = jnp.sum(jnp.where(hit, w, 0.0), axis=1, keepdims=True)
        wm = w_t * msk
        num_c = wm * gathered
        den_c = wm
        if valid is not None:
            num_c = jnp.where(valid, num_c, 0.0)
            den_c = jnp.where(valid, den_c, 0.0)
        num_acc[...] += num_c
        den_acc[...] += den_c
    else:
        num_c = msk * gathered
        if valid is not None:
            num_c = jnp.where(valid, num_c, 0.0)
        num_acc[...] += num_c

    @pl.when(j == nj - 1)
    def _finalize():
        num_total = jnp.sum(num_acc[...])
        if has_weight:
            den_total = jnp.sum(den_acc[...])
        else:
            # denom = sum(mask); the mask block is identical for every j.
            den_src = msk if valid is None else jnp.where(valid, msk, 0.0)
            den_total = jnp.sum(den_src)
        num_out_ref[...] = jnp.broadcast_to(num_total, num_out_ref.shape)
        den_out_ref[...] = jnp.broadcast_to(den_total, den_out_ref.shape)


@functools.partial(jax.jit, static_argnames=("block_rows", "max_block_cols"))
def masked_nll_loss(pred, target, mask, weight=None,
                    block_rows=None, max_block_cols=2048):
    """pred: (N, C) log-probs (any float dtype); target: (N,) int; mask: (B, S), B*S == N."""
    n, c = pred.shape
    itemsize = jnp.dtype(pred.dtype).itemsize
    has_weight = weight is not None

    # --- class-axis tiling (only kicks in for large vocabularies) ---
    if c <= max_block_cols or c <= _LANE:
        tc = c
    else:
        tc = max(_LANE, (min(max_block_cols, c) // _LANE) * _LANE)
    grid_j = -(-c // tc)

    # --- chip-aware VMEM budget ---
    vmem_cap = _vmem_capacity_bytes()
    if vmem_cap >= 100 * 1024 * 1024:        # v5e / v6e: 128 MiB physical VMEM
        vmem_limit = 64 * 1024 * 1024
        row_budget = 36 * 1024 * 1024
    else:                                    # v7x: 64 MiB per TensorCore
        vmem_limit = 44 * 1024 * 1024
        row_budget = 24 * 1024 * 1024

    # VMEM bytes per streamed row: double-buffered pred + target + mask tiles,
    # plus resident (tn, 1) f32 accumulators (everything lane-pads to 128).
    padded_tc = _round_up(tc, _LANE)
    n_acc = 2 if has_weight else 1
    per_row = 2 * (padded_tc * itemsize + 2 * _LANE * 4) + n_acc * _LANE * 4
    max_rows = max(_SUBLANE, (row_budget // per_row) // _SUBLANE * _SUBLANE)
    if block_rows is not None:
        max_rows = min(max_rows, max(_SUBLANE, (block_rows // _SUBLANE) * _SUBLANE))
    tn = n if n <= max_rows else max_rows
    grid_i = -(-n // tn)
    need_row_mask = (n % tn) != 0

    target_2d = target.astype(jnp.int32).reshape(n, 1)
    mask_2d = mask.reshape(n, 1).astype(jnp.float32)

    inputs = [pred, target_2d, mask_2d]
    in_specs = [
        pl.BlockSpec((tn, tc), lambda i, j: (i, j)),   # pred, native dtype
        pl.BlockSpec((tn, 1), lambda i, j: (i, 0)),    # target
        pl.BlockSpec((tn, 1), lambda i, j: (i, 0)),    # mask
    ]
    scratch = [pltpu.VMEM((tn, 1), jnp.float32)]       # num row-partials
    if has_weight:
        inputs.append(weight.astype(jnp.float32).reshape(1, c))
        in_specs.append(pl.BlockSpec((1, tc), lambda i, j: (0, j)))
        scratch.append(pltpu.VMEM((tn, 1), jnp.float32))   # den row-partials

    kernel = functools.partial(
        _masked_nll_kernel, n_rows=n,
        has_weight=has_weight, need_row_mask=need_row_mask)

    p_num, p_den = pl.pallas_call(
        kernel,
        out_shape=(
            jax.ShapeDtypeStruct((grid_i, _SUBLANE, _LANE), jnp.float32),
            jax.ShapeDtypeStruct((grid_i, _SUBLANE, _LANE), jnp.float32),
        ),
        grid_spec=pltpu.PrefetchScalarGridSpec(
            num_scalar_prefetch=0,
            grid=(grid_i, grid_j),
            in_specs=in_specs,
            out_specs=[
                pl.BlockSpec((1, _SUBLANE, _LANE), lambda i, j: (i, 0, 0)),
                pl.BlockSpec((1, _SUBLANE, _LANE), lambda i, j: (i, 0, 0)),
            ],
            scratch_shapes=scratch,
        ),
        compiler_params=pltpu.CompilerParams(
            dimension_semantics=("parallel", "arbitrary"),
            vmem_limit_bytes=vmem_limit,
        ),
    )(*inputs)

    num = jnp.sum(p_num[:, 0, 0])
    den = jnp.sum(p_den[:, 0, 0])
    return -num / den


def _reference(pred, target, mask, weight=None):
    pred = pred.astype(jnp.float32)
    mask_ = mask.reshape(-1).astype(jnp.float32)
    tgt = target.astype(jnp.int32)
    gathered = jnp.take_along_axis(pred, tgt.reshape(-1, 1), axis=1)[:, 0]
    if weight is None:
        num = -jnp.sum(mask_ * gathered)
        den = jnp.sum(mask_)
    else:
        w_t = weight.astype(jnp.float32)[tgt]
        num = -jnp.sum(w_t * mask_ * gathered)
        den = jnp.sum(w_t * mask_)
    return num / den


if __name__ == "__main__":
    key = jax.random.PRNGKey(0)

    def make_case(k, batch, seq_len, n_classes):
        k1, k2, k3, k4 = jax.random.split(k, 4)
        n = batch * seq_len
        logits = jax.random.normal(k1, (n, n_classes), dtype=jnp.float32)
        pred = jax.nn.log_softmax(logits, axis=-1)      # NLLLoss expects log-probs
        target = jax.random.randint(k2, (n,), 0, n_classes, dtype=jnp.int32)
        mask = (jax.random.uniform(k3, (batch, seq_len)) > 0.3).astype(jnp.float32)
        mask = mask.at[0, 0].set(1.0)                   # ensure mask sum > 0
        w = jax.random.uniform(k4, (n_classes,), minval=0.5, maxval=1.5,
                               dtype=jnp.float32)
        return pred, target, mask, w

    ka, kb = jax.random.split(key)

    # 1) unweighted, single tile (batch=2, seq=8, C=8).
    pred, target, mask, w = make_case(ka, 2, 8, 8)
    out = jax.block_until_ready(masked_nll_loss(pred, target, mask))
    ref = _reference(pred, target, mask)
    assert jnp.allclose(out, ref, atol=1e-5, rtol=1e-5), (out, ref)

    # 2) weighted, multi-row-tile accumulation (block_rows=8 -> grid_i=2).
    out = jax.block_until_ready(
        masked_nll_loss(pred, target, mask, weight=w, block_rows=8))
    ref = _reference(pred, target, mask, weight=w)
    assert jnp.allclose(out, ref, atol=1e-5, rtol=1e-5), (out, ref)

    # 3) bf16 log-probs stay bf16 across HBM; one-hot gather in bf16 (exact).
    pred_bf16 = pred.astype(jnp.bfloat16)
    out = jax.block_until_ready(masked_nll_loss(pred_bf16, target, mask))
    ref = _reference(pred_bf16, target, mask)
    assert jnp.allclose(out, ref, atol=1e-2, rtol=1e-2), (out, ref)

    # 4) ragged row tiles (n=15, tn=8) + tiled/ragged class axis (C=200, tc=128),
    #    weighted path -> exercises row-validity gating and class-tile accumulation.
    pred, target, mask, w = make_case(kb, 3, 5, 200)
    out = jax.block_until_ready(
        masked_nll_loss(pred, target, mask, weight=w,
                        block_rows=8, max_block_cols=128))
    ref = _reference(pred, target, mask, weight=w)
    assert jnp.allclose(out, ref, atol=1e-5, rtol=1e-5), (out, ref)

    # 5) same ragged configuration, unweighted path.
    out = jax.block_until_ready(
        masked_nll_loss(pred, target, mask, block_rows=8, max_block_cols=128))
    ref = _reference(pred, target, mask)
    assert jnp.allclose(out, ref, atol=1e-5, rtol=1e-5), (out, ref)

    print("KERNEL_OK")
</pallas_src>

<mosaic_0001>
module attributes {stable_mosaic.version = 11 : i64} {
  func.func @_masked_nll_kernel(%arg0: i32, %arg1: i32, %arg2: memref<16x8xf32, #tpu.memory_space<vmem>>, %arg3: memref<16x1xi32, #tpu.memory_space<vmem>>, %arg4: memref<16x1xf32, #tpu.memory_space<vmem>>, %arg5: memref<1x8x128xf32, #tpu.memory_space<vmem>>, %arg6: memref<1x8x128xf32, #tpu.memory_space<vmem>>, %arg7: memref<16x1xf32, #tpu.memory_space<vmem>>) attributes {dimension_semantics = [#tpu.dimension_semantics<parallel>, #tpu.dimension_semantics<arbitrary>], iteration_bounds = array<i64: 1, 1>, scalar_prefetch = 0 : i64, scratch_operands = 1 : i64, tpu.core_type = #tpu.core_type<tc>, window_params = [{transform_indices = @transform_0, window_bounds = array<i64: 16, 8>}, {transform_indices = @transform_1, window_bounds = array<i64: 16, 1>}, {transform_indices = @transform_2, window_bounds = array<i64: 16, 1>}, {transform_indices = @transform_3, window_bounds = array<i64: 1, 8, 128>}, {transform_indices = @transform_4, window_bounds = array<i64: 1, 8, 128>}]} {
    %c0_i32 = arith.constant 0 : i32
    %0 = arith.cmpi eq, %arg1, %c0_i32 : i32
    %1 = arith.extui %0 : i1 to i32
    %c0_i32_0 = arith.constant 0 : i32
    %2 = arith.cmpi ne, %1, %c0_i32_0 : i32
    scf.if %2 {
      %cst_13 = arith.constant 0.000000e+00 : f32
      %23 = vector.broadcast %cst_13 : f32 to vector<16x1xf32>
      %c0_14 = arith.constant 0 : index
      %c0_15 = arith.constant 0 : index
      %24 = vector.load %arg7[%c0_14, %c0_15] : memref<16x1xf32, #tpu.memory_space<vmem>>, vector<16x1xf32>
      tpu.vector_store %arg7[%c0_14, %c0_15], %23 {strides = array<i32>} : memref<16x1xf32, #tpu.memory_space<vmem>>, vector<16x1xf32>,
    } else {
    }
    %c0 = arith.constant 0 : index
    %c0_1 = arith.constant 0 : index
    %3 = vector.load %arg2[%c0, %c0_1] : memref<16x8xf32, #tpu.memory_space<vmem>>, vector<16x8xf32>
    %c0_2 = arith.constant 0 : index
    %c0_3 = arith.constant 0 : index
    %4 = vector.load %arg3[%c0_2, %c0_3] : memref<16x1xi32, #tpu.memory_space<vmem>>, vector<16x1xi32>
    %c0_4 = arith.constant 0 : index
    %c0_5 = arith.constant 0 : index
    %5 = vector.load %arg4[%c0_4, %c0_5] : memref<16x1xf32, #tpu.memory_space<vmem>>, vector<16x1xf32>
    %6 = tpu.iota {dimensions = array<i32: 1>} : vector<16x8xi32>
    %c8_i32 = arith.constant 8 : i32
    %7 = arith.muli %arg1, %c8_i32 : i32
    %8 = vector.broadcast %7 : i32 to vector<16x1xi32>
    %9 = arith.subi %4, %8 : vector<16x1xi32>
    %10 = vector.broadcast %9 : vector<16x1xi32> to vector<16x8xi32>
    %11 = arith.cmpi eq, %6, %10 : vector<16x8xi32>
    %cst = arith.constant 0.000000e+00 : f32
    %12 = vector.broadcast %cst : f32 to vector<16x8xf32>
    %13 = arith.select %11, %3, %12 : vector<16x8xi1>, vector<16x8xf32>
    %cst_6 = arith.constant dense<0.000000e+00> : vector<16xf32>
    %14 = vector.multi_reduction <add>, %13, %cst_6 [1] : vector<16x8xf32> to vector<16xf32>
    %15 = vector.shape_cast %14 : vector<16xf32> to vector<16x1xf32>
    %16 = arith.mulf %5, %15 : vector<16x1xf32>
    %c0_7 = arith.constant 0 : index
    %c0_8 = arith.constant 0 : index
    %17 = vector.load %arg7[%c0_7, %c0_8] : memref<16x1xf32, #tpu.memory_space<vmem>>, vector<16x1xf32>
    %18 = arith.addf %17, %16 : vector<16x1xf32>
    %c0_9 = arith.constant 0 : index
    %c0_10 = arith.constant 0 : index
    %19 = vector.load %arg7[%c0_9, %c0_10] : memref<16x1xf32, #tpu.memory_space<vmem>>, vector<16x1xf32>
    tpu.vector_store %arg7[%c0_9, %c0_10], %18 {strides = array<i32>} : memref<16x1xf32, #tpu.memory_space<vmem>>, vector<16x1xf32>,
    %c0_i32_11 = arith.constant 0 : i32
    %20 = arith.cmpi eq, %arg1, %c0_i32_11 : i32
    %21 = arith.extui %20 : i1 to i32
    %c0_i32_12 = arith.constant 0 : i32
    %22 = arith.cmpi ne, %21, %c0_i32_12 : i32
    scf.if %22 {
      %c0_13 = arith.constant 0 : index
      %c0_14 = arith.constant 0 : index
      %23 = vector.load %arg7[%c0_13, %c0_14] : memref<16x1xf32, #tpu.memory_space<vmem>>, vector<16x1xf32>
      %24 = vector.shape_cast %23 : vector<16x1xf32> to vector<1x16x1xf32>
      %cst_15 = arith.constant dense<0.000000e+00> : vector<1xf32>
      %25 = vector.multi_reduction <add>, %24, %cst_15 [1, 2] : vector<1x16x1xf32> to vector<1xf32>
      %26 = vector.shape_cast %25 : vector<1xf32> to vector<1x1x1xf32>
      %27 = vector.extract %26[0, 0, 0] : f32 from vector<1x1x1xf32>
      %28 = vector.shape_cast %5 : vector<16x1xf32> to vector<1x16x1xf32>
      %cst_16 = arith.constant dense<0.000000e+00> : vector<1xf32>
      %29 = vector.multi_reduction <add>, %28, %cst_16 [1, 2] : vector<1x16x1xf32> to vector<1xf32>
      %30 = vector.shape_cast %29 : vector<1xf32> to vector<1x1x1xf32>
      %31 = vector.extract %30[0, 0, 0] : f32 from vector<1x1x1xf32>
      %32 = vector.broadcast %27 : f32 to vector<1x8x128xf32>
      %c0_17 = arith.constant 0 : index
      %c0_18 = arith.constant 0 : index
      %c0_19 = arith.constant 0 : index
      %33 = vector.load %arg5[%c0_17, %c0_18, %c0_19] : memref<1x8x128xf32, #tpu.memory_space<vmem>>, vector<1x8x128xf32>
      tpu.vector_store %arg5[%c0_17, %c0_18, %c0_19], %32 {strides = array<i32>} : memref<1x8x128xf32, #tpu.memory_space<vmem>>, vector<1x8x128xf32>,
      %34 = vector.broadcast %31 : f32 to vector<1x8x128xf32>
      %c0_20 = arith.constant 0 : index
      %c0_21 = arith.constant 0 : index
      %c0_22 = arith.constant 0 : index
      %35 = vector.load %arg6[%c0_20, %c0_21, %c0_22] : memref<1x8x128xf32, #tpu.memory_space<vmem>>, vector<1x8x128xf32>
      tpu.vector_store %arg6[%c0_20, %c0_21, %c0_22], %34 {strides = array<i32>} : memref<1x8x128xf32, #tpu.memory_space<vmem>>, vector<1x8x128xf32>,
    } else {
    }
    return
  }
  func.func @transform_0(%arg0: i32, %arg1: i32) -> (i32, i32) {
    %c0_i32 = arith.constant 0 : i32
    return %arg0, %arg1 : i32, i32
  }
  func.func @transform_1(%arg0: i32, %arg1: i32) -> (i32, i32) {
    %c0_i32 = arith.constant 0 : i32
    %c0_i32_0 = arith.constant 0 : i32
    return %arg0, %c0_i32 : i32, i32
  }
  func.func @transform_2(%arg0: i32, %arg1: i32) -> (i32, i32) {
    %c0_i32 = arith.constant 0 : i32
    %c0_i32_0 = arith.constant 0 : i32
    return %arg0, %c0_i32 : i32, i32
  }
  func.func @transform_3(%arg0: i32, %arg1: i32) -> (i32, i32, i32) {
    %c0_i32 = arith.constant 0 : i32
    %c0_i32_0 = arith.constant 0 : i32
    %c0_i32_1 = arith.constant 0 : i32
    return %arg0, %c0_i32, %c0_i32_0 : i32, i32, i32
  }
  func.func @transform_4(%arg0: i32, %arg1: i32) -> (i32, i32, i32) {
    %c0_i32 = arith.constant 0 : i32
    %c0_i32_0 = arith.constant 0 : i32
    %c0_i32_1 = arith.constant 0 : i32
    return %arg0, %c0_i32, %c0_i32_0 : i32, i32, i32
  }
}

</mosaic_0001>

<llo_original>
// kernel: masked_nll_loss.1
$region0: #{masked_nll_loss.1}
  #allocation0 [shape = 'u32[]', space=smem, size = 0x4, offset = 0x4, fixed_abs, tag = 'smem constant byte address 0x4 - core index']
  #allocation1 [shape = 'u32[144,128]{1,0:T(1,128)}', space=vmem, size = 0x12000, scoped, tag = 'internal scratch']
  #allocation2 [shape = 'f32[16,1]{1,0:T(8,128)}', space=vmem, size = 0x2000, scoped, tag = 'scratch operand']
  %s0 = inlined_call_operand.vmem [shape: f32[16,8], index: 0, kind: input, shape index: {}]
  %s1 = inlined_call_operand.vmem [shape: s32[16,1], index: 1, kind: input, shape index: {}]
  %s2 = inlined_call_operand.vmem [shape: f32[16,1], index: 2, kind: input, shape index: {}]
  %s3 = inlined_call_operand.vmem [shape: f32[1,8,128], index: 3, kind: output, shape index: {0}]
  %s4 = inlined_call_operand.vmem [shape: f32[1,8,128], index: 4, kind: output, shape index: {1}]
  %5 = xla_tuple %s3, %s4
  %s6 = sld [smem:[#allocation0]]
  $region38: #{masked_nll_loss.1} parent=0
    _
  %s8 = ssub.s32 1, %s6
  %s9 = scalar_select 0, %s8, %s6
  // Predicated region
  $region2: #{masked_nll_loss.1} parent=0 // pred_check
    _
  $region3: #{masked_nll_loss.1} parent=0 // pred_check_branch
    %11 = sbr.rel (0) target = $region5
  $region4: #{masked_nll_loss.1} parent=0 // pred_region
    _
  $region5: #{masked_nll_loss.1} parent=0 // pred_fallthru
    _
  // Predicated region
  $region6: #{masked_nll_loss.1} parent=0 // pred_check
    _
  $region7: #{masked_nll_loss.1} parent=0 // pred_check_branch
    %13 = sbr.rel (0) target = $region9
  $region8: #{masked_nll_loss.1} parent=0 // pred_region
    _
  $region9: #{masked_nll_loss.1} parent=0 // pred_fallthru
    _
  // Predicated region
  $region10: #{masked_nll_loss.1} parent=0 // pred_check
    _
  $region11: #{masked_nll_loss.1} parent=0 // pred_check_branch
    %15 = sbr.rel (0) target = $region13
  $region12: #{masked_nll_loss.1} parent=0 // pred_region
    _
  $region13: #{masked_nll_loss.1} parent=0 // pred_fallthru
    _
  %p16 = scmp.eq.s32.totalorder 0, 0
  // Predicated region
  $region14: #{masked_nll_loss.1} parent=0 // pred_check
    %p17 = pneg %p16
  $region15: #{masked_nll_loss.1} parent=0 // pred_check_branch
    %19 = sbr.rel (%p17) target = $region17
  $region16: #{masked_nll_loss.1} parent=0 // pred_region
    %vm20 = vcmask 7168
    %21 = vst.msk [vmem:[#allocation2] sm:$0xff] %vm20, 0.0
    %22 = vst.msk [vmem:[#allocation2 + $0x8] sm:$0xff] %vm20, 0.0
  $region17: #{masked_nll_loss.1} parent=0 // pred_fallthru
    _
  %v23 = vld [vmem:[%s0] sm:$0xff]
  %v24 = vld [vmem:[%s0 + $0x8] sm:$0xff]
  %v25 = vld [vmem:[%s1] sm:$0xff]
  %v26 = vld [vmem:[%s1 + $0x8] sm:$0xff]
  %v27 = vld [vmem:[%s2] sm:$0xff]
  %v28 = vld [vmem:[%s2 + $0x8] sm:$0xff]
  %v29 = vlaneseq
  %v30 = vand.u32 %v29, 127
  %s31 = smul.u32 0, 8
  %v32 = vstv %s31
  %v33 = vsub.s32 %v25, %v32
  %v34 = vsub.s32 %v26, %v32
  %35 = vset.pattern.permute.xlu0 0
  %36 = vperm.xlu0 %35, %v33
  %v37 = vpop.permute.xlu0 %36
  %38 = vset.pattern.permute.xlu0 0
  %39 = vperm.xlu0 %38, %v34
  %v40 = vpop.permute.xlu0 %39
  %vm41 = vcmp.eq.s32.totalorder %v30, %v37
  %vm42 = vcmp.eq.s32.totalorder %v30, %v40
  %v43 = vsel %vm41, %v23, 0.0
  %v44 = vsel %vm42, %v24, 0.0
  %vm45 = vcmask 64512
  %v46 = vsel %vm45, %v43, 0.0
  %47 = vadd.xlane.f32.xlu0 %v46
  %v48 = vpop.xlane.xlu0 %47
  %v49 = vsel %vm45, %v44, 0.0
  %50 = vadd.xlane.f32.xlu0 %v49
  %v51 = vpop.xlane.xlu0 %50
  %v52 = vmul.f32 %v27, %v48
  %v53 = vmul.f32 %v28, %v51
  %v54 = vld [vmem:[#allocation2] sm:$0xff]
  %v55 = vld [vmem:[#allocation2 + $0x8] sm:$0xff]
  %v56 = vadd.f32 %v54, %v52
  %v57 = vadd.f32 %v55, %v53
  %vm58 = vcmask 7168
  %59 = vst.msk [vmem:[#allocation2] sm:$0xff] %vm58, %v56
  %60 = vst.msk [vmem:[#allocation2 + $0x8] sm:$0xff] %vm58, %v57
  // Predicated region
  $region18: #{masked_nll_loss.1} parent=0 // pred_check
    %p61 = pneg %p16
  $region19: #{masked_nll_loss.1} parent=0 // pred_check_branch
    %63 = sbr.rel (%p61) target = $region21
  $region20: #{masked_nll_loss.1} parent=0 // pred_region
    %v64 = vld [vmem:[#allocation2] sm:$0xff]
    %v65 = vld [vmem:[#allocation2 + $0x8] sm:$0xff]
    %v66 = vsel %vm58, %v64, 0.0
    %v67 = vsel %vm58, %v65, 0.0
    %v68 = vadd.f32 %v66, %v67
    %69 = vadd.xlane.f32.xlu0 %v68
    %v70 = vpop.xlane.xlu0 %69
    %v71 = vrot.slane %v70, 4
    %v72 = vadd.f32 %v70, %v71
    %v73 = vrot.slane %v72, 2
    %v74 = vadd.f32 %v72, %v73
    %v75 = vrot.slane %v74, 1
    %v76 = vadd.f32 %v74, %v75
    %s77 = vtos %v76
    %v78 = vsel %vm58, %v27, 0.0
    %v79 = vsel %vm58, %v28, 0.0
    %v80 = vadd.f32 %v78, %v79
    %81 = vadd.xlane.f32.xlu0 %v80
    %v82 = vpop.xlane.xlu0 %81
    %v83 = vrot.slane %v82, 4
    %v84 = vadd.f32 %v82, %v83
    %v85 = vrot.slane %v84, 2
    %v86 = vadd.f32 %v84, %v85
    %v87 = vrot.slane %v86, 1
    %v88 = vadd.f32 %v86, %v87
    %s89 = vtos %v88
    %v90 = vstv %s77
    %91 = vst [vmem:[%s3] sm:$0xff] %v90
    %v92 = vstv %s89
    %93 = vst [vmem:[%s4] sm:$0xff] %v92
  $region21: #{masked_nll_loss.1} parent=0 // pred_fallthru
    _
  // Predicated region
  $region22: #{masked_nll_loss.1} parent=0 // pred_check
    _
  $region23: #{masked_nll_loss.1} parent=0 // pred_check_branch
    %95 = sbr.rel (0) target = $region25
  $region24: #{masked_nll_loss.1} parent=0 // pred_region
    _
  $region25: #{masked_nll_loss.1} parent=0 // pred_fallthru
    _
  // Predicated region
  $region26: #{masked_nll_loss.1} parent=0 // pred_check
    _
  $region27: #{masked_nll_loss.1} parent=0 // pred_check_branch
    %97 = sbr.rel (0) target = $region29
  $region28: #{masked_nll_loss.1} parent=0 // pred_region
    _
  $region29: #{masked_nll_loss.1} parent=0 // pred_fallthru
    _
  // Predicated region
  $region30: #{masked_nll_loss.1} parent=0 // pred_check
    _
  $region31: #{masked_nll_loss.1} parent=0 // pred_check_branch
    %99 = sbr.rel (0) target = $region33
  $region32: #{masked_nll_loss.1} parent=0 // pred_region
    _
  $region33: #{masked_nll_loss.1} parent=0 // pred_fallthru
    _
  // Predicated region
  $region34: #{masked_nll_loss.1} parent=0 // pred_check
    _
  $region35: #{masked_nll_loss.1} parent=0 // pred_check_branch
    %101 = sbr.rel (0) target = $region37
  $region36: #{masked_nll_loss.1} parent=0 // pred_region
    _
  $region37: #{masked_nll_loss.1} parent=0 // pred_fallthru
    _

</llo_original>
